<compile_context>
chip_gen: v7x
topology: tpu7x:2x2x1
jax: 0.10.0
libtpu: 0.0.40
codegen_flags: <defaults>
</compile_context>

<pallas_src>
import jax
import jax.numpy as jnp
from jax.experimental import pallas as pl
from jax.experimental.pallas import tpu as pltpu

HIDDEN = 256


def _critic_kernel(s_ref, a_ref,
                   w1_ref, b1_ref,
                   w2_ref, b2_ref,
                   w5_ref, b5_ref,
                   w36_ref, b36_ref,
                   out_ref):
    # ---- fused layer 1: single MXU pass for both heads ----
    # LHS = (state | action) built in-kernel (23 lanes, no wrapper concat);
    # RHS = [S+A, 2*HIDDEN] bf16 weight packing both heads along N.
    sa = jnp.concatenate([s_ref[...].astype(jnp.bfloat16),
                          a_ref[...].astype(jnp.bfloat16)], axis=-1)
    y1 = jnp.dot(sa, w1_ref[...], preferred_element_type=jnp.float32) + b1_ref[...]
    y1 = jnp.maximum(y1, 0.0)                       # [TB, 2*HIDDEN], f32
    h = y1[:, :HIDDEN].astype(jnp.bfloat16)         # Q1 head
    g = y1[:, HIDDEN:].astype(jnp.bfloat16)         # Q2 head

    # ---- layer 2 per head: K=256, N=256 exactly fill one MXU weight tile ----
    h2 = jnp.dot(h, w2_ref[...], preferred_element_type=jnp.float32) + b2_ref[...]
    h2 = jnp.maximum(h2, 0.0)
    g2 = jnp.dot(g, w5_ref[...], preferred_element_type=jnp.float32) + b5_ref[...]
    g2 = jnp.maximum(g2, 0.0)

    # ---- layer 3 on VPU + XLU (avoid N=1 MXU matmuls) ----
    q1 = jnp.sum(h2 * w36_ref[0:1, :], axis=-1, keepdims=True)   # [TB, 1]
    q2 = jnp.sum(g2 * w36_ref[1:2, :], axis=-1, keepdims=True)   # [TB, 1]

    # single lane-denser [TB, 2] store (q1 in col 0, q2 in col 1)
    out_ref[...] = jnp.concatenate([q1, q2], axis=1) + b36_ref[...]


def _round_up(x, m):
    return ((x + m - 1) // m) * m


def _pick_batch_tile(B, block_b, min_rows_per_split=256):
    """Batch-tile size: multiple of 8 (or == B), and >=2 grid steps when the
    batch is big enough so v7x's two TensorCores both get work."""
    if B <= block_b:
        if B >= 2 * min_rows_per_split:
            return min(_round_up(pl.cdiv(B, 2), 8), block_b)
        return B                      # tb == full dim: no divisibility needed
    return block_b


def critic_forward(state, action, params, *, block_b=2048):
    """Forward pass of the twin-Q Critic. Returns (q1, q2), each [B, 1]."""
    B, state_dim = state.shape
    action_dim = action.shape[1]

    tb = _pick_batch_tile(B, block_b)
    grid = (pl.cdiv(B, tb),)

    def act_spec(d):
        return pl.BlockSpec((tb, d), lambda i: (i, 0))

    def resident(arr):
        # whole-array block, constant index -> weight stays VMEM-resident
        return pl.BlockSpec(arr.shape, lambda i: (0, 0))

    q12 = pl.pallas_call(
        _critic_kernel,
        out_shape=jax.ShapeDtypeStruct((B, 2), jnp.float32),
        grid=grid,
        in_specs=[
            act_spec(state_dim), act_spec(action_dim),
            resident(params["w1"]), resident(params["b1"]),
            resident(params["w2"]), resident(params["b2"]),
            resident(params["w5"]), resident(params["b5"]),
            resident(params["w36"]), resident(params["b36"]),
        ],
        out_specs=pl.BlockSpec((tb, 2), lambda i: (i, 0)),
        compiler_params=pltpu.CompilerParams(
            dimension_semantics=("parallel",),
            # large tiles overshoot v5e's 16 MiB scoped-VMEM default; 48 MiB
            # still leaves headroom on v7x's 64 MiB physical VMEM per TC.
            vmem_limit_bytes=48 * 1024 * 1024,
        ),
    )(state, action,
      params["w1"], params["b1"],
      params["w2"], params["b2"],
      params["w5"], params["b5"],
      params["w36"], params["b36"])

    return q12[:, 0:1], q12[:, 1:2]


def init_critic_params(key, state_dim, action_dim, hidden=HIDDEN):
    """nn.Linear-style init U(-1/sqrt(fan_in), +), packed for the kernel."""

    def linear(k, fan_in, fan_out):
        bound = 1.0 / float(fan_in) ** 0.5
        kw, kb = jax.random.split(k)
        w = jax.random.uniform(kw, (fan_in, fan_out), jnp.float32, -bound, bound)
        b = jax.random.uniform(kb, (1, fan_out), jnp.float32, -bound, bound)
        return w, b

    in_dim = state_dim + action_dim
    k1, k2, k3, k4, k5, k6 = jax.random.split(key, 6)
    w1, b1 = linear(k1, in_dim, hidden)
    w2, b2 = linear(k2, hidden, hidden)
    w3, b3 = linear(k3, hidden, 1)
    w4, b4 = linear(k4, in_dim, hidden)
    w5, b5 = linear(k5, hidden, hidden)
    w6, b6 = linear(k6, hidden, 1)

    params = {
        # layer 1: both heads fused along the output axis -> single MXU RHS
        "w1": jnp.concatenate([w1, w4], axis=1).astype(jnp.bfloat16),  # [S+A, 2H]
        "b1": jnp.concatenate([b1, b4], axis=1),                        # [1, 2H] f32
        "w2": w2.astype(jnp.bfloat16), "b2": b2,
        "w5": w5.astype(jnp.bfloat16), "b5": b5,
        # final layers as row vectors for the VPU mul + lane-reduce path
        "w36": jnp.stack([w3[:, 0], w6[:, 0]], axis=0),                 # [2, H] f32
        "b36": jnp.concatenate([b3, b6], axis=1),                       # [1, 2] f32
    }
    return params


def _reference_forward(state, action, params):
    """Plain-JAX reference mirroring the kernel math (same bf16 quantization)."""
    sa = jnp.concatenate([state.astype(jnp.bfloat16),
                          action.astype(jnp.bfloat16)], axis=-1)
    y1 = jnp.dot(sa, params["w1"], preferred_element_type=jnp.float32) + params["b1"]
    y1 = jnp.maximum(y1, 0.0)
    h = y1[:, :HIDDEN].astype(jnp.bfloat16)
    g = y1[:, HIDDEN:].astype(jnp.bfloat16)
    h2 = jnp.maximum(
        jnp.dot(h, params["w2"], preferred_element_type=jnp.float32) + params["b2"], 0.0)
    g2 = jnp.maximum(
        jnp.dot(g, params["w5"], preferred_element_type=jnp.float32) + params["b5"], 0.0)
    q1 = jnp.sum(h2 * params["w36"][0:1], axis=-1, keepdims=True) + params["b36"][:, 0:1]
    q2 = jnp.sum(g2 * params["w36"][1:2], axis=-1, keepdims=True) + params["b36"][:, 1:2]
    return q1, q2


if __name__ == "__main__":
    key = jax.random.PRNGKey(0)
    k_param, k_state, k_action = jax.random.split(key, 3)

    state_dim = 17
    action_dim = 6
    params = init_critic_params(k_param, state_dim, action_dim)

    fwd = jax.jit(critic_forward)

    # small batch (single tile, tb == B)
    batch = 8
    state = jax.random.normal(k_state, (batch, state_dim), jnp.float32)
    action = jax.random.normal(k_action, (batch, action_dim), jnp.float32)
    q1, q2 = fwd(state, action, params)
    jax.block_until_ready((q1, q2))
    r1, r2 = _reference_forward(state, action, params)
    assert q1.shape == (batch, 1) and q2.shape == (batch, 1)
    assert jnp.allclose(q1, r1, atol=1e-3, rtol=1e-3)
    assert jnp.allclose(q2, r2, atol=1e-3, rtol=1e-3)

    # larger batch: tb = 512, grid = 2 (exercises the split/parallel path)
    big = 1024
    kb1, kb2 = jax.random.split(jax.random.PRNGKey(1))
    state_b = jax.random.normal(kb1, (big, state_dim), jnp.float32)
    action_b = jax.random.normal(kb2, (big, action_dim), jnp.float32)
    q1b, q2b = fwd(state_b, action_b, params)
    jax.block_until_ready((q1b, q2b))
    r1b, r2b = _reference_forward(state_b, action_b, params)
    assert jnp.allclose(q1b, r1b, atol=1e-3, rtol=1e-3)
    assert jnp.allclose(q2b, r2b, atol=1e-3, rtol=1e-3)

    # ragged batch: tb = 392, grid = 2 with a partial last tile
    rag = 777
    kr1, kr2 = jax.random.split(jax.random.PRNGKey(2))
    state_r = jax.random.normal(kr1, (rag, state_dim), jnp.float32)
    action_r = jax.random.normal(kr2, (rag, action_dim), jnp.float32)
    q1r, q2r = fwd(state_r, action_r, params)
    jax.block_until_ready((q1r, q2r))
    r1r, r2r = _reference_forward(state_r, action_r, params)
    assert jnp.allclose(q1r, r1r, atol=1e-3, rtol=1e-3)
    assert jnp.allclose(q2r, r2r, atol=1e-3, rtol=1e-3)

    print("KERNEL_OK")
</pallas_src>

<mosaic_0001>
module attributes {stable_mosaic.version = 11 : i64} {
  func.func @_critic_kernel(%arg0: i32, %arg1: memref<8x17xf32, #tpu.memory_space<vmem>>, %arg2: memref<8x6xf32, #tpu.memory_space<vmem>>, %arg3: memref<23x512xbf16, #tpu.memory_space<vmem>>, %arg4: memref<1x512xf32, #tpu.memory_space<vmem>>, %arg5: memref<256x256xbf16, #tpu.memory_space<vmem>>, %arg6: memref<1x256xf32, #tpu.memory_space<vmem>>, %arg7: memref<256x256xbf16, #tpu.memory_space<vmem>>, %arg8: memref<1x256xf32, #tpu.memory_space<vmem>>, %arg9: memref<2x256xf32, #tpu.memory_space<vmem>>, %arg10: memref<1x2xf32, #tpu.memory_space<vmem>>, %arg11: memref<8x2xf32, #tpu.memory_space<vmem>>) attributes {dimension_semantics = [#tpu.dimension_semantics<parallel>], iteration_bounds = array<i64: 1>, scalar_prefetch = 0 : i64, scratch_operands = 0 : i64, tpu.core_type = #tpu.core_type<tc>, window_params = [{transform_indices = @transform_0, window_bounds = array<i64: 8, 17>}, {transform_indices = @transform_1, window_bounds = array<i64: 8, 6>}, {pipeline_mode = #tpu.pipeline_mode<synchronous>, transform_indices = @transform_2, window_bounds = array<i64: 23, 512>}, {pipeline_mode = #tpu.pipeline_mode<synchronous>, transform_indices = @transform_3, window_bounds = array<i64: 1, 512>}, {pipeline_mode = #tpu.pipeline_mode<synchronous>, transform_indices = @transform_4, window_bounds = array<i64: 256, 256>}, {pipeline_mode = #tpu.pipeline_mode<synchronous>, transform_indices = @transform_5, window_bounds = array<i64: 1, 256>}, {pipeline_mode = #tpu.pipeline_mode<synchronous>, transform_indices = @transform_6, window_bounds = array<i64: 256, 256>}, {pipeline_mode = #tpu.pipeline_mode<synchronous>, transform_indices = @transform_7, window_bounds = array<i64: 1, 256>}, {pipeline_mode = #tpu.pipeline_mode<synchronous>, transform_indices = @transform_8, window_bounds = array<i64: 2, 256>}, {pipeline_mode = #tpu.pipeline_mode<synchronous>, transform_indices = @transform_9, window_bounds = array<i64: 1, 2>}, {transform_indices = @transform_10, window_bounds = array<i64: 8, 2>}]} {
    %c0 = arith.constant 0 : index
    %c0_0 = arith.constant 0 : index
    %0 = vector.load %arg1[%c0, %c0_0] : memref<8x17xf32, #tpu.memory_space<vmem>>, vector<8x17xf32>
    %1 = arith.truncf %0 : vector<8x17xf32> to vector<8x17xbf16>
    %c0_1 = arith.constant 0 : index
    %c0_2 = arith.constant 0 : index
    %2 = vector.load %arg2[%c0_1, %c0_2] : memref<8x6xf32, #tpu.memory_space<vmem>>, vector<8x6xf32>
    %3 = arith.truncf %2 : vector<8x6xf32> to vector<8x6xbf16>
    %4 = tpu.concatenate %1, %3 in 1 : vector<8x17xbf16>, vector<8x6xbf16> -> vector<8x23xbf16>
    %c0_3 = arith.constant 0 : index
    %c0_4 = arith.constant 0 : index
    %5 = vector.load %arg3[%c0_3, %c0_4] : memref<23x512xbf16, #tpu.memory_space<vmem>>, vector<23x512xbf16>
    %cst = arith.constant dense<0.000000e+00> : vector<8x512xf32>
    %6 = tpu.matmul %4, %5, %cst {dimension_numbers = #tpu.dot_dimension_numbers<[1], [0], [0], [1], [0, 0, 1, 1], [], []>} : vector<8x23xbf16>, vector<23x512xbf16>, vector<8x512xf32> -> vector<8x512xf32>
    %c0_5 = arith.constant 0 : index
    %c0_6 = arith.constant 0 : index
    %7 = vector.load %arg4[%c0_5, %c0_6] : memref<1x512xf32, #tpu.memory_space<vmem>>, vector<1x512xf32>
    %8 = vector.broadcast %7 : vector<1x512xf32> to vector<8x512xf32>
    %9 = arith.addf %6, %8 : vector<8x512xf32>
    %cst_7 = arith.constant 0.000000e+00 : f32
    %10 = vector.broadcast %cst_7 : f32 to vector<8x512xf32>
    %11 = arith.maximumf %9, %10 : vector<8x512xf32>
    %12 = vector.extract_strided_slice %11 {offsets = [0, 0], sizes = [8, 256], strides = [1, 1]} : vector<8x512xf32> to vector<8x256xf32>
    %13 = arith.truncf %12 : vector<8x256xf32> to vector<8x256xbf16>
    %14 = vector.extract_strided_slice %11 {offsets = [0, 256], sizes = [8, 256], strides = [1, 1]} : vector<8x512xf32> to vector<8x256xf32>
    %15 = arith.truncf %14 : vector<8x256xf32> to vector<8x256xbf16>
    %c0_8 = arith.constant 0 : index
    %c0_9 = arith.constant 0 : index
    %16 = vector.load %arg5[%c0_8, %c0_9] : memref<256x256xbf16, #tpu.memory_space<vmem>>, vector<256x256xbf16>
    %cst_10 = arith.constant dense<0.000000e+00> : vector<8x256xf32>
    %17 = tpu.matmul %13, %16, %cst_10 {dimension_numbers = #tpu.dot_dimension_numbers<[1], [0], [0], [1], [0, 0, 1, 1], [], []>} : vector<8x256xbf16>, vector<256x256xbf16>, vector<8x256xf32> -> vector<8x256xf32>
    %c0_11 = arith.constant 0 : index
    %c0_12 = arith.constant 0 : index
    %18 = vector.load %arg6[%c0_11, %c0_12] : memref<1x256xf32, #tpu.memory_space<vmem>>, vector<1x256xf32>
    %19 = vector.broadcast %18 : vector<1x256xf32> to vector<8x256xf32>
    %20 = arith.addf %17, %19 : vector<8x256xf32>
    %cst_13 = arith.constant 0.000000e+00 : f32
    %21 = vector.broadcast %cst_13 : f32 to vector<8x256xf32>
    %22 = arith.maximumf %20, %21 : vector<8x256xf32>
    %c0_14 = arith.constant 0 : index
    %c0_15 = arith.constant 0 : index
    %23 = vector.load %arg7[%c0_14, %c0_15] : memref<256x256xbf16, #tpu.memory_space<vmem>>, vector<256x256xbf16>
    %cst_16 = arith.constant dense<0.000000e+00> : vector<8x256xf32>
    %24 = tpu.matmul %15, %23, %cst_16 {dimension_numbers = #tpu.dot_dimension_numbers<[1], [0], [0], [1], [0, 0, 1, 1], [], []>} : vector<8x256xbf16>, vector<256x256xbf16>, vector<8x256xf32> -> vector<8x256xf32>
    %c0_17 = arith.constant 0 : index
    %c0_18 = arith.constant 0 : index
    %25 = vector.load %arg8[%c0_17, %c0_18] : memref<1x256xf32, #tpu.memory_space<vmem>>, vector<1x256xf32>
    %26 = vector.broadcast %25 : vector<1x256xf32> to vector<8x256xf32>
    %27 = arith.addf %24, %26 : vector<8x256xf32>
    %cst_19 = arith.constant 0.000000e+00 : f32
    %28 = vector.broadcast %cst_19 : f32 to vector<8x256xf32>
    %29 = arith.maximumf %27, %28 : vector<8x256xf32>
    %c0_20 = arith.constant 0 : index
    %c0_21 = arith.constant 0 : index
    %30 = vector.load %arg9[%c0_20, %c0_21] : memref<2x256xf32, #tpu.memory_space<vmem>>, vector<1x256xf32>
    %31 = vector.broadcast %30 : vector<1x256xf32> to vector<8x256xf32>
    %32 = arith.mulf %22, %31 : vector<8x256xf32>
    %cst_22 = arith.constant dense<0.000000e+00> : vector<8xf32>
    %33 = vector.multi_reduction <add>, %32, %cst_22 [1] : vector<8x256xf32> to vector<8xf32>
    %34 = vector.shape_cast %33 : vector<8xf32> to vector<8x1xf32>
    %c1 = arith.constant 1 : index
    %c0_23 = arith.constant 0 : index
    %35 = vector.load %arg9[%c1, %c0_23] : memref<2x256xf32, #tpu.memory_space<vmem>>, vector<1x256xf32>
    %36 = vector.broadcast %35 : vector<1x256xf32> to vector<8x256xf32>
    %37 = arith.mulf %29, %36 : vector<8x256xf32>
    %cst_24 = arith.constant dense<0.000000e+00> : vector<8xf32>
    %38 = vector.multi_reduction <add>, %37, %cst_24 [1] : vector<8x256xf32> to vector<8xf32>
    %39 = vector.shape_cast %38 : vector<8xf32> to vector<8x1xf32>
    %40 = tpu.concatenate %34, %39 in 1 : vector<8x1xf32>, vector<8x1xf32> -> vector<8x2xf32>
    %c0_25 = arith.constant 0 : index
    %c0_26 = arith.constant 0 : index
    %41 = vector.load %arg10[%c0_25, %c0_26] : memref<1x2xf32, #tpu.memory_space<vmem>>, vector<1x2xf32>
    %42 = vector.broadcast %41 : vector<1x2xf32> to vector<8x2xf32>
    %43 = arith.addf %40, %42 : vector<8x2xf32>
    %c0_27 = arith.constant 0 : index
    %c0_28 = arith.constant 0 : index
    %44 = vector.load %arg11[%c0_27, %c0_28] : memref<8x2xf32, #tpu.memory_space<vmem>>, vector<8x2xf32>
    tpu.vector_store %arg11[%c0_27, %c0_28], %43 {strides = array<i32>} : memref<8x2xf32, #tpu.memory_space<vmem>>, vector<8x2xf32>,
    return
  }
  func.func @transform_0(%arg0: i32) -> (i32, i32) {
    %c0_i32 = arith.constant 0 : i32
    %c0_i32_0 = arith.constant 0 : i32
    return %arg0, %c0_i32 : i32, i32
  }
  func.func @transform_1(%arg0: i32) -> (i32, i32) {
    %c0_i32 = arith.constant 0 : i32
    %c0_i32_0 = arith.constant 0 : i32
    return %arg0, %c0_i32 : i32, i32
  }
  func.func @transform_2(%arg0: i32) -> (i32, i32) {
    %c0_i32 = arith.constant 0 : i32
    %c0_i32_0 = arith.constant 0 : i32
    %c0_i32_1 = arith.constant 0 : i32
    return %c0_i32, %c0_i32_0 : i32, i32
  }
  func.func @transform_3(%arg0: i32) -> (i32, i32) {
    %c0_i32 = arith.constant 0 : i32
    %c0_i32_0 = arith.constant 0 : i32
    %c0_i32_1 = arith.constant 0 : i32
    return %c0_i32, %c0_i32_0 : i32, i32
  }
  func.func @transform_4(%arg0: i32) -> (i32, i32) {
    %c0_i32 = arith.constant 0 : i32
    %c0_i32_0 = arith.constant 0 : i32
    %c0_i32_1 = arith.constant 0 : i32
    return %c0_i32, %c0_i32_0 : i32, i32
  }
  func.func @transform_5(%arg0: i32) -> (i32, i32) {
    %c0_i32 = arith.constant 0 : i32
    %c0_i32_0 = arith.constant 0 : i32
    %c0_i32_1 = arith.constant 0 : i32
    return %c0_i32, %c0_i32_0 : i32, i32
  }
  func.func @transform_6(%arg0: i32) -> (i32, i32) {
    %c0_i32 = arith.constant 0 : i32
    %c0_i32_0 = arith.constant 0 : i32
    %c0_i32_1 = arith.constant 0 : i32
    return %c0_i32, %c0_i32_0 : i32, i32
  }
  func.func @transform_7(%arg0: i32) -> (i32, i32) {
    %c0_i32 = arith.constant 0 : i32
    %c0_i32_0 = arith.constant 0 : i32
    %c0_i32_1 = arith.constant 0 : i32
    return %c0_i32, %c0_i32_0 : i32, i32
  }
  func.func @transform_8(%arg0: i32) -> (i32, i32) {
    %c0_i32 = arith.constant 0 : i32
    %c0_i32_0 = arith.constant 0 : i32
    %c0_i32_1 = arith.constant 0 : i32
    return %c0_i32, %c0_i32_0 : i32, i32
  }
  func.func @transform_9(%arg0: i32) -> (i32, i32) {
    %c0_i32 = arith.constant 0 : i32
    %c0_i32_0 = arith.constant 0 : i32
    %c0_i32_1 = arith.constant 0 : i32
    return %c0_i32, %c0_i32_0 : i32, i32
  }
  func.func @transform_10(%arg0: i32) -> (i32, i32) {
    %c0_i32 = arith.constant 0 : i32
    %c0_i32_0 = arith.constant 0 : i32
    return %arg0, %c0_i32 : i32, i32
  }
}

</mosaic_0001>

<llo_original>
// kernel: critic_forward.1
$region0: #{critic_forward.1}
  #allocation0 [shape = 'u32[]', space=smem, size = 0x4, offset = 0x4, fixed_abs, tag = 'smem constant byte address 0x4 - core index']
  #allocation1 [shape = 'u32[144,128]{1,0:T(1,128)}', space=vmem, size = 0x12000, scoped, tag = 'internal scratch']
  %s0 = inlined_call_operand.hbm [shape: f32[8,17], index: 0, kind: input, shape index: {}]
  %s1 = inlined_call_operand.hbm [shape: f32[8,6], index: 1, kind: input, shape index: {}]
  %s2 = inlined_call_operand.hbm [shape: bf16[23,512], index: 2, kind: input, shape index: {}]
  %s3 = inlined_call_operand.vmem [shape: f32[1,512], index: 3, kind: input, shape index: {}]
  %s4 = inlined_call_operand.hbm [shape: bf16[256,256], index: 4, kind: input, shape index: {}]
  %s5 = inlined_call_operand.vmem [shape: f32[1,256], index: 5, kind: input, shape index: {}]
  %s6 = inlined_call_operand.hbm [shape: bf16[256,256], index: 6, kind: input, shape index: {}]
  %s7 = inlined_call_operand.vmem [shape: f32[1,256], index: 7, kind: input, shape index: {}]
  %s8 = inlined_call_operand.vmem [shape: f32[2,256], index: 8, kind: input, shape index: {}]
  %s9 = inlined_call_operand.vmem [shape: f32[1,2], index: 9, kind: input, shape index: {}]
  %s10 = inlined_call_operand.vmem [shape: f32[8,2], index: 10, kind: output, shape index: {}]
  %s11 = sld [smem:[#allocation0]]
  $region70: #{critic_forward.1} parent=0
    _
  %s13 = ssub.s32 1, %s11
  %s14 = scalar_select 0, %s13, %s11
  $region1: #{critic_forward.1} parent=0
    #allocation2 [shape = 'u8[4096]{0}', space=vmem, size = 0x1000, scoped, tag = 'input window, operand 0, single buffered']
    #allocation3 [shape = 's32[1]{0}', space=sflag, size = 0x4, scoped, tag = 'scoped memory for critic_forward.1']
    #allocation4 [shape = 'u8[4096]{0}', space=vmem, size = 0x1000, scoped, tag = 'input window, operand 1, single buffered']
    #allocation5 [shape = 's32[1]{0}', space=sflag, size = 0x4, scoped, tag = 'scoped memory for critic_forward.1']
    #allocation6 [shape = 'u8[24576]{0}', space=vmem, size = 0x6000, scoped, tag = 'input window, operand 2, single buffered']
    #allocation7 [shape = 'u8[131072]{0}', space=vmem, size = 0x20000, scoped, tag = 'input window, operand 4, single buffered']
    #allocation8 [shape = 's32[1]{0}', space=sflag, size = 0x4, scoped, tag = 'scoped memory for critic_forward.1']
    #allocation9 [shape = 'u8[131072]{0}', space=vmem, size = 0x20000, scoped, tag = 'input window, operand 6, single buffered']
    %15 = vsyncpa [#allocation3], 0
    %16 = vsyncpa [#allocation5], 0
    %17 = vsyncpa [#allocation8], 0
    // Predicated region
    $region2: #{critic_forward.1} parent=1 // pred_check
      _
    $region3: #{critic_forward.1} parent=1 // pred_check_branch
      %19 = sbr.rel (0) target = $region5
    $region4: #{critic_forward.1} parent=1 // pred_region
      %s21 = ssub.s32 128, 128
      %22 = vsyncadd [#allocation3], %s21
      %s24 = sshll.u32 [#allocation2], 4
      %s25 = int_to_ptr.vmem [resolvable:$true] %s24
      %27 = dma.hbm_to_vmem [thread:$0]  %s0, 128, %s25, [#allocation3]
    $region5: #{critic_forward.1} parent=1 // pred_fallthru
      _
    // Predicated region
    $region6: #{critic_forward.1} parent=1 // pred_check
      _
    $region7: #{critic_forward.1} parent=1 // pred_check_branch
      %29 = sbr.rel (0) target = $region9
    $region8: #{critic_forward.1} parent=1 // pred_region
      %s31 = ssub.s32 128, 128
      %32 = vsyncadd [#allocation5], %s31
      %s34 = sshll.u32 [#allocation4], 4
      %s35 = int_to_ptr.vmem [resolvable:$true] %s34
      %37 = dma.hbm_to_vmem [thread:$0]  %s1, 128, %s35, [#allocation5]
    $region9: #{critic_forward.1} parent=1 // pred_fallthru
      _
    // Predicated region
    $region10: #{critic_forward.1} parent=1 // pred_check
      _
    $region11: #{critic_forward.1} parent=1 // pred_check_branch
      %39 = sbr.rel (0) target = $region13
    $region12: #{critic_forward.1} parent=1 // pred_region
      %s41 = ssub.s32 768, 768
      %42 = vsyncadd [#allocation5], %s41
      %s43 = sshll.u32 [#allocation6], 4
      %s44 = int_to_ptr.vmem [resolvable:$true] %s43
      %49 = dma.hbm_to_vmem [thread:$0]  %s2, 768, %s44, [#allocation5], 256, 256, 16
    $region13: #{critic_forward.1} parent=1 // pred_fallthru
      _
    // Predicated region
    $region14: #{critic_forward.1} parent=1 // pred_check
      _
    $region15: #{critic_forward.1} parent=1 // pred_check_branch
      %51 = sbr.rel (0) target = $region17
    $region16: #{critic_forward.1} parent=1 // pred_region
      _
    $region17: #{critic_forward.1} parent=1 // pred_fallthru
      _
    // Predicated region
    $region18: #{critic_forward.1} parent=1 // pred_check
      _
    $region19: #{critic_forward.1} parent=1 // pred_check_branch
      %53 = sbr.rel (0) target = $region21
    $region20: #{critic_forward.1} parent=1 // pred_region
      %s55 = ssub.s32 4096, 4096
      %56 = vsyncadd [#allocation8], %s55
      %s57 = sshll.u32 [#allocation7], 4
      %s58 = int_to_ptr.vmem [resolvable:$true] %s57
      %63 = dma.hbm_to_vmem [thread:$0]  %s4, 4096, %s58, [#allocation8], 128, 128, 8
    $region21: #{critic_forward.1} parent=1 // pred_fallthru
      _
    // Predicated region
    $region22: #{critic_forward.1} parent=1 // pred_check
      _
    $region23: #{critic_forward.1} parent=1 // pred_check_branch
      %65 = sbr.rel (0) target = $region25
    $region24: #{critic_forward.1} parent=1 // pred_region
      _
    $region25: #{critic_forward.1} parent=1 // pred_fallthru
      _
    // Predicated region
    $region26: #{critic_forward.1} parent=1 // pred_check
      _
    $region27: #{critic_forward.1} parent=1 // pred_check_branch
      %67 = sbr.rel (0) target = $region29
    $region28: #{critic_forward.1} parent=1 // pred_region
      %s69 = ssub.s32 4096, 4096
      %70 = vsyncadd [#allocation8], %s69
      %s71 = sshll.u32 [#allocation9], 4
      %s72 = int_to_ptr.vmem [resolvable:$true] %s71
      %77 = dma.hbm_to_vmem [thread:$0]  %s6, 4096, %s72, [#allocation8], 128, 128, 8
    $region29: #{critic_forward.1} parent=1 // pred_fallthru
      _
    // Predicated region
    $region30: #{critic_forward.1} parent=1 // pred_check
      _
    $region31: #{critic_forward.1} parent=1 // pred_check_branch
      %79 = sbr.rel (0) target = $region33
    $region32: #{critic_forward.1} parent=1 // pred_region
      _
    $region33: #{critic_forward.1} parent=1 // pred_fallthru
      _
    // Predicated region
    $region34: #{critic_forward.1} parent=1 // pred_check
      _
    $region35: #{critic_forward.1} parent=1 // pred_check_branch
      %81 = sbr.rel (0) target = $region37
    $region36: #{critic_forward.1} parent=1 // pred_region
      _
    $region37: #{critic_forward.1} parent=1 // pred_fallthru
      _
    // Predicated region
    $region38: #{critic_forward.1} parent=1 // pred_check
      _
    $region39: #{critic_forward.1} parent=1 // pred_check_branch
      %83 = sbr.rel (0) target = $region41
    $region40: #{critic_forward.1} parent=1 // pred_region
      _
    $region41: #{critic_forward.1} parent=1 // pred_fallthru
      _
    // Predicated region
    $region42: #{critic_forward.1} parent=1 // pred_check
      _
    $region43: #{critic_forward.1} parent=1 // pred_check_branch
      %85 = sbr.rel (0) target = $region45
    $region44: #{critic_forward.1} parent=1 // pred_region
      %86 = dma.done [#allocation3], 128
    $region45: #{critic_forward.1} parent=1 // pred_fallthru
      _
    // Predicated region
    $region46: #{critic_forward.1} parent=1 // pred_check
      _
    $region47: #{critic_forward.1} parent=1 // pred_check_branch
      %88 = sbr.rel (0) target = $region49
    $region48: #{critic_forward.1} parent=1 // pred_region
      %89 = dma.done [#allocation5], 128
    $region49: #{critic_forward.1} parent=1 // pred_fallthru
      _
    // Predicated region
    $region50: #{critic_forward.1} parent=1 // pred_check
      _
    $region51: #{critic_forward.1} parent=1 // pred_check_branch
      %91 = sbr.rel (0) target = $region53
    $region52: #{critic_forward.1} parent=1 // pred_region
      %92 = dma.done [#allocation5], 768
    $region53: #{critic_forward.1} parent=1 // pred_fallthru
      _
    // Predicated region
    $region54: #{critic_forward.1} parent=1 // pred_check
      _
    $region55: #{critic_forward.1} parent=1 // pred_check_branch
      %94 = sbr.rel (0) target = $region57
    $region56: #{critic_forward.1} parent=1 // pred_region
      %95 = dma.done [#allocation8], 4096
    $region57: #{critic_forward.1} parent=1 // pred_fallthru
      _
    // Predicated region
    $region58: #{critic_forward.1} parent=1 // pred_check
      _
    $region59: #{critic_forward.1} parent=1 // pred_check_branch
      %97 = sbr.rel (0) target = $region61
    $region60: #{critic_forward.1} parent=1 // pred_region
      %98 = dma.done [#allocation8], 4096
    $region61: #{critic_forward.1} parent=1 // pred_fallthru
      _
    %v100 = vld [vmem:[#allocation2] sm:$0xff]
    %v101 = vpack.c.bf16 %v100, %v100
    %v102 = vld [vmem:[#allocation4] sm:$0xff]
    %v103 = vpack.c.bf16 %v102, %v102
    %105 = vrot.lane.b32.xlu0 %v103, 17
    %v106 = vpop.permute.xlu0 %105
    %vm107 = vcmask 138240
    %v110 = vsel %vm107, %v101, %v106
    %v111 = vld [vmem:[#allocation6] sm:$0xff]
    %v112 = vld [vmem:[#allocation6 + $0x8] sm:$0xff]
    %v113 = vld [vmem:[#allocation6 + $0x10] sm:$0xff]
    %v114 = vld [vmem:[#allocation6 + $0x18] sm:$0xff]
    %v115 = vld [vmem:[#allocation6 + $0x20] sm:$0xff]
    %v116 = vld [vmem:[#allocation6 + $0x28] sm:$0xff]
    %v117 = vld [vmem:[%s3] sm:$0xf]
    %v119 = vlaneseq
    %v120 = vshrl.u32 %v119, 7
    %v121 = vsub.s32 0, %v120
    %v122 = vrot.slane %v117, %v121
    %v123 = vlaneseq
    %v124 = vshrl.u32 %v123, 7
    %v125 = vsub.s32 1, %v124
    %v126 = vrot.slane %v117, %v125
    %v127 = vlaneseq
    %v128 = vshrl.u32 %v127, 7
    %v129 = vsub.s32 2, %v128
    %v130 = vrot.slane %v117, %v129
    %v131 = vlaneseq
    %v132 = vshrl.u32 %v131, 7
    %v133 = vsub.s32 3, %v132
    %v134 = vrot.slane %v117, %v133
    %v145 = vunpack.c.l.b16 %v111
    %v146 = vunpack.c.h.b16 %v111
    %v147 = vunpack.c.l.b16 %v112
    %v148 = vunpack.c.h.b16 %v112
    %v149 = vunpack.c.l.b16 %v113
    %v150 = vunpack.c.h.b16 %v113
    %v151 = vunpack.c.l.b16 %v114
    %v152 = vunpack.c.h.b16 %v114
    %v153 = vunpack.c.l.b16 %v115
    %v154 = vunpack.c.h.b16 %v115
    %v155 = vunpack.c.l.b16 %v116
    %v156 = vunpack.c.h.b16 %v116
    %v157 = vpack.c.b16 %v149, %v145
    %v158 = vpack.c.b16 %v150, %v146
    %v159 = vpack.c.b16 %v151, %v147
    %v160 = vpack.c.b16 %v152, %v148
    %v161 = vpack.c.b16 %v153, %v153
    %v162 = vpack.c.b16 %v154, %v154
    %v163 = vpack.c.b16 %v155, %v155
    %v164 = vpack.c.b16 %v156, %v156
    %vm169 = vcmask 187392
    %v170 = vsel %vm169, %v110, 0
    %vm172 = vcmask 1042432
    %vm173 = vcmask 1043456
    %v174 = vsel %vm172, 4294967295, 65535
    %v175 = vsel %vm173, %v174, 0
    %v177 = vand.u32 %v161, %v175
    %v180 = vand.u32 %v162, %v175
    %v183 = vand.u32 %v163, %v175
    %v186 = vand.u32 %v164, %v175
    %188 = vmatprep.subr.bf16.mxu0 %v158
    %189 = vmatpush1.bf16.msra.mxu0 %v157
    %190 = vmatprep.subr.bf16.mxu0 %v180
    %191 = vmatpush1.bf16.msra.mxu0 %v177
    %192 = vmatprep.subr.bf16.mxu0 0
    %193 = vmatpush1.bf16.msra.mxu0 0
    %194 = vmatprep.subr.bf16.mxu0 0
    %195 = vmatpush1.bf16.msra.mxu0 0
    %196 = vmatprep.subr.bf16.mxu0 0
    %197 = vmatpush1.bf16.msra.mxu0 0
    %198 = vmatprep.subr.bf16.mxu0 0
    %199 = vmatpush1.bf16.msra.mxu0 0
    %200 = vmatprep.subr.bf16.mxu0 0
    %201 = vmatpush1.bf16.msra.mxu0 0
    %202 = vmatprep.subr.bf16.mxu0 0
    %203 = vmatpush1.bf16.msra.mxu0 0
    %204 = vmatprep.subr.bf16.mxu0 0
    %205 = vmatpush1.bf16.msra.mxu0 0
    %206 = vmatprep.subr.bf16.mxu0 0
    %207 = vmatpush1.bf16.msra.mxu0 0
    %208 = vmatprep.subr.bf16.mxu0 0
    %209 = vmatpush1.bf16.msra.mxu0 0
    %210 = vmatprep.subr.bf16.mxu0 0
    %211 = vmatpush1.bf16.msra.mxu0 0
    %212 = vmatprep.subr.bf16.mxu0 0
    %213 = vmatpush1.bf16.msra.mxu0 0
    %214 = vmatprep.subr.bf16.mxu0 0
    %215 = vmatpush1.bf16.msra.mxu0 0
    %216 = vmatprep.subr.bf16.mxu0 0
    %217 = vmatpush1.bf16.msra.mxu0 0
    %218 = vmatprep.subr.bf16.mxu0 0
    %219 = vmatpush1.bf16.msra.mxu0 0
    %220 = vmatprep.mubr.bf16.mxu0 0
    %221 = vmatmul.mubr.bf16.gmra.mrb[0].mxu0 %v170
    %v222 = vpop.f32.mrb[0].mxu0
    %v223 = vadd.f32 %v122, %v222
    %v224 = vpop.f32.mrb[0].mxu0
    %v225 = vadd.f32 %v126, %v224
    %v226 = vpop.f32.mrb[0].mxu0
    %v227 = vpop.f32.mrb[0].mxu0
    %228 = vdwg.mxu0
    %229 = vmatprep.subr.bf16.mxu0 %v160
    %230 = vmatpush1.bf16.msra.mxu0 %v159
    %231 = vmatprep.subr.bf16.mxu0 %v186
    %232 = vmatpush1.bf16.msra.mxu0 %v183
    %233 = vmatprep.subr.bf16.mxu0 0
    %234 = vmatpush1.bf16.msra.mxu0 0
    %235 = vmatprep.subr.bf16.mxu0 0
    %236 = vmatpush1.bf16.msra.mxu0 0
    %237 = vmatprep.subr.bf16.mxu0 0
    %238 = vmatpush1.bf16.msra.mxu0 0
    %239 = vmatprep.subr.bf16.mxu0 0
    %240 = vmatpush1.bf16.msra.mxu0 0
    %241 = vmatprep.subr.bf16.mxu0 0
    %242 = vmatpush1.bf16.msra.mxu0 0
    %243 = vmatprep.subr.bf16.mxu0 0
    %244 = vmatpush1.bf16.msra.mxu0 0
    %245 = vmatprep.subr.bf16.mxu0 0
    %246 = vmatpush1.bf16.msra.mxu0 0
    %247 = vmatprep.subr.bf16.mxu0 0
    %248 = vmatpush1.bf16.msra.mxu0 0
    %249 = vmatprep.subr.bf16.mxu0 0
    %250 = vmatpush1.bf16.msra.mxu0 0
    %251 = vmatprep.subr.bf16.mxu0 0
    %252 = vmatpush1.bf16.msra.mxu0 0
    %253 = vmatprep.subr.bf16.mxu0 0
    %254 = vmatpush1.bf16.msra.mxu0 0
    %255 = vmatprep.subr.bf16.mxu0 0
    %256 = vmatpush1.bf16.msra.mxu0 0
    %257 = vmatprep.subr.bf16.mxu0 0
    %258 = vmatpush1.bf16.msra.mxu0 0
    %259 = vmatprep.subr.bf16.mxu0 0
    %260 = vmatpush1.bf16.msra.mxu0 0
    %261 = vmatprep.mubr.bf16.mxu0 0
    %262 = vmatmul.mubr.bf16.gmra.mrb[0].mxu0 %v170
    %v263 = vpop.f32.mrb[0].mxu0
    %v264 = vadd.f32 %v130, %v263
    %v265 = vpop.f32.mrb[0].mxu0
    %v266 = vadd.f32 %v134, %v265
    %v267 = vpop.f32.mrb[0].mxu0
    %v268 = vpop.f32.mrb[0].mxu0
    %269 = vdwg.mxu0
    %v270 = vmax.f32 %v223, 0.0
    %v271 = vmax.f32 %v225, 0.0
    %v272 = vmax.f32 %v264, 0.0
    %v273 = vmax.f32 %v266, 0.0
    %v274 = vpack.c.bf16 %v270, %v270
    %v275 = vpack.c.bf16 %v271, %v271
    %v276 = vpack.c.bf16 %v272, %v272
    %v277 = vpack.c.bf16 %v273, %v273
    %v278 = vld [vmem:[#allocation7] sm:$0xff]
    %v279 = vld [vmem:[#allocation7 + $0x8] sm:$0xff]
    %v280 = vld [vmem:[#allocation7 + $0x10] sm:$0xff]
    %v281 = vld [vmem:[#allocation7 + $0x18] sm:$0xff]
    %v282 = vld [vmem:[#allocation7 + $0x20] sm:$0xff]
    %v283 = vld [vmem:[#allocation7 + $0x28] sm:$0xff]
    %v284 = vld [vmem:[#allocation7 + $0x30] sm:$0xff]
    %v285 = vld [vmem:[#allocation7 + $0x38] sm:$0xff]
    %v286 = vld [vmem:[#allocation7 + $0x40] sm:$0xff]
    %v287 = vld [vmem:[#allocation7 + $0x48] sm:$0xff]
    %v288 = vld [vmem:[#allocation7 + $0x50] sm:$0xff]
    %v289 = vld [vmem:[#allocation7 + $0x58] sm:$0xff]
    %v290 = vld [vmem:[#allocation7 + $0x60] sm:$0xff]
    %v291 = vld [vmem:[#allocation7 + $0x68] sm:$0xff]
    %v292 = vld [vmem:[#allocation7 + $0x70] sm:$0xff]
    %v293 = vld [vmem:[#allocation7 + $0x78] sm:$0xff]
    %v294 = vld [vmem:[#allocation7 + $0x80] sm:$0xff]
    %v295 = vld [vmem:[#allocation7 + $0x88] sm:$0xff]
    %v296 = vld [vmem:[#allocation7 + $0x90] sm:$0xff]
    %v297 = vld [vmem:[#allocation7 + $0x98] sm:$0xff]
    %v298 = vld [vmem:[#allocation7 + $0xa0] sm:$0xff]
    %v299 = vld [vmem:[#allocation7 + $0xa8] sm:$0xff]
    %v300 = vld [vmem:[#allocation7 + $0xb0] sm:$0xff]
    %v301 = vld [vmem:[#allocation7 + $0xb8] sm:$0xff]
    %v302 = vld [vmem:[#allocation7 + $0xc0] sm:$0xff]
    %v303 = vld [vmem:[#allocation7 + $0xc8] sm:$0xff]
    %v304 = vld [vmem:[#allocation7 + $0xd0] sm:$0xff]
    %v305 = vld [vmem:[#allocation7 + $0xd8] sm:$0xff]
    %v306 = vld [vmem:[#allocation7 + $0xe0] sm:$0xff]
    %v307 = vld [vmem:[#allocation7 + $0xe8] sm:$0xff]
    %v308 = vld [vmem:[#allocation7 + $0xf0] sm:$0xff]
    %v309 = vld [vmem:[#allocation7 + $0xf8] sm:$0xff]
    %v310 = vld [vmem:[%s5] sm:$0x3]
    %v312 = vlaneseq
    %v313 = vshrl.u32 %v312, 7
    %v314 = vsub.s32 0, %v313
    %v315 = vrot.slane %v310, %v314
    %v316 = vlaneseq
    %v317 = vshrl.u32 %v316, 7
    %v318 = vsub.s32 1, %v317
    %v319 = vrot.slane %v310, %v318
    %v354 = vunpack.c.l.b16 %v278
    %v355 = vunpack.c.h.b16 %v278
    %v356 = vunpack.c.l.b16 %v279
    %v357 = vunpack.c.h.b16 %v279
    %v358 = vunpack.c.l.b16 %v280
    %v359 = vunpack.c.h.b16 %v280
    %v360 = vunpack.c.l.b16 %v281
    %v361 = vunpack.c.h.b16 %v281
    %v362 = vunpack.c.l.b16 %v282
    %v363 = vunpack.c.h.b16 %v282
    %v364 = vunpack.c.l.b16 %v283
    %v365 = vunpack.c.h.b16 %v283
    %v366 = vunpack.c.l.b16 %v284
    %v367 = vunpack.c.h.b16 %v284
    %v368 = vunpack.c.l.b16 %v285
    %v369 = vunpack.c.h.b16 %v285
    %v370 = vunpack.c.l.b16 %v286
    %v371 = vunpack.c.h.b16 %v286
    %v372 = vunpack.c.l.b16 %v287
    %v373 = vunpack.c.h.b16 %v287
    %v374 = vunpack.c.l.b16 %v288
    %v375 = vunpack.c.h.b16 %v288
    %v376 = vunpack.c.l.b16 %v289
    %v377 = vunpack.c.h.b16 %v289
    %v378 = vunpack.c.l.b16 %v290
    %v379 = vunpack.c.h.b16 %v290
    %v380 = vunpack.c.l.b16 %v291
    %v381 = vunpack.c.h.b16 %v291
    %v382 = vunpack.c.l.b16 %v292
    %v383 = vunpack.c.h.b16 %v292
    %v384 = vunpack.c.l.b16 %v293
    %v385 = vunpack.c.h.b16 %v293
    %v386 = vunpack.c.l.b16 %v294
    %v387 = vunpack.c.h.b16 %v294
    %v388 = vunpack.c.l.b16 %v295
    %v389 = vunpack.c.h.b16 %v295
    %v390 = vunpack.c.l.b16 %v296
    %v391 = vunpack.c.h.b16 %v296
    %v392 = vunpack.c.l.b16 %v297
    %v393 = vunpack.c.h.b16 %v297
    %v394 = vunpack.c.l.b16 %v298
    %v395 = vunpack.c.h.b16 %v298
    %v396 = vunpack.c.l.b16 %v299
    %v397 = vunpack.c.h.b16 %v299
    %v398 = vunpack.c.l.b16 %v300
    %v399 = vunpack.c.h.b16 %v300
    %v400 = vunpack.c.l.b16 %v301
    %v401 = vunpack.c.h.b16 %v301
    %v402 = vunpack.c.l.b16 %v302
    %v403 = vunpack.c.h.b16 %v302
    %v404 = vunpack.c.l.b16 %v303
    %v405 = vunpack.c.h.b16 %v303
    %v406 = vunpack.c.l.b16 %v304
    %v407 = vunpack.c.h.b16 %v304
    %v408 = vunpack.c.l.b16 %v305
    %v409 = vunpack.c.h.b16 %v305
    %v410 = vunpack.c.l.b16 %v306
    %v411 = vunpack.c.h.b16 %v306
    %v412 = vunpack.c.l.b16 %v307
    %v413 = vunpack.c.h.b16 %v307
    %v414 = vunpack.c.l.b16 %v308
    %v415 = vunpack.c.h.b16 %v308
    %v416 = vunpack.c.l.b16 %v309
    %v417 = vunpack.c.h.b16 %v309
    %v418 = vpack.c.b16 %v356, %v354
    %v419 = vpack.c.b16 %v357, %v355
    %v420 = vpack.c.b16 %v360, %v358
    %v421 = vpack.c.b16 %v361, %v359
    %v422 = vpack.c.b16 %v364, %v362
    %v423 = vpack.c.b16 %v365, %v363
    %v424 = vpack.c.b16 %v368, %v366
    %v425 = vpack.c.b16 %v369, %v367
    %v426 = vpack.c.b16 %v372, %v370
    %v427 = vpack.c.b16 %v373, %v371
    %v428 = vpack.c.b16 %v376, %v374
    %v429 = vpack.c.b16 %v377, %v375
    %v430 = vpack.c.b16 %v380, %v378
    %v431 = vpack.c.b16 %v381, %v379
    %v432 = vpack.c.b16 %v384, %v382
    %v433 = vpack.c.b16 %v385, %v383
    %v434 = vpack.c.b16 %v388, %v386
    %v435 = vpack.c.b16 %v389, %v387
    %v436 = vpack.c.b16 %v392, %v390
    %v437 = vpack.c.b16 %v393, %v391
    %v438 = vpack.c.b16 %v396, %v394
    %v439 = vpack.c.b16 %v397, %v395
    %v440 = vpack.c.b16 %v400, %v398
    %v441 = vpack.c.b16 %v401, %v399
    %v442 = vpack.c.b16 %v404, %v402
    %v443 = vpack.c.b16 %v405, %v403
    %v444 = vpack.c.b16 %v408, %v406
    %v445 = vpack.c.b16 %v409, %v407
    %v446 = vpack.c.b16 %v412, %v410
    %v447 = vpack.c.b16 %v413, %v411
    %v448 = vpack.c.b16 %v416, %v414
    %v449 = vpack.c.b16 %v417, %v415
    %482 = vmatprep.subr.bf16.mxu0 %v419
    %483 = vmatpush1.bf16.msra.mxu0 %v418
    %484 = vmatprep.subr.bf16.mxu0 %v421
    %485 = vmatpush1.bf16.msra.mxu0 %v420
    %486 = vmatprep.subr.bf16.mxu0 %v423
    %487 = vmatpush1.bf16.msra.mxu0 %v422
    %488 = vmatprep.subr.bf16.mxu0 %v425
    %489 = vmatpush1.bf16.msra.mxu0 %v424
    %490 = vmatprep.subr.bf16.mxu0 %v427
    %491 = vmatpush1.bf16.msra.mxu0 %v426
    %492 = vmatprep.subr.bf16.mxu0 %v429
    %493 = vmatpush1.bf16.msra.mxu0 %v428
    %494 = vmatprep.subr.bf16.mxu0 %v431
    %495 = vmatpush1.bf16.msra.mxu0 %v430
    %496 = vmatprep.subr.bf16.mxu0 %v433
    %497 = vmatpush1.bf16.msra.mxu0 %v432
    %498 = vmatprep.subr.bf16.mxu0 %v435
    %499 = vmatpush1.bf16.msra.mxu0 %v434
    %500 = vmatprep.subr.bf16.mxu0 %v437
    %501 = vmatpush1.bf16.msra.mxu0 %v436
    %502 = vmatprep.subr.bf16.mxu0 %v439
    %503 = vmatpush1.bf16.msra.mxu0 %v438
    %504 = vmatprep.subr.bf16.mxu0 %v441
    %505 = vmatpush1.bf16.msra.mxu0 %v440
    %506 = vmatprep.subr.bf16.mxu0 %v443
    %507 = vmatpush1.bf16.msra.mxu0 %v442
    %508 = vmatprep.subr.bf16.mxu0 %v445
    %509 = vmatpush1.bf16.msra.mxu0 %v444
    %510 = vmatprep.subr.bf16.mxu0 %v447
    %511 = vmatpush1.bf16.msra.mxu0 %v446
    %512 = vmatprep.subr.bf16.mxu0 %v449
    %513 = vmatpush1.bf16.msra.mxu0 %v448
    %514 = vmatprep.mubr.bf16.mxu0 %v275
    %515 = vmatmul.mubr.bf16.gmra.mrb[0].mxu0 %v274
    %v516 = vpop.f32.mrb[0].mxu0
    %v517 = vadd.f32 %v315, %v516
    %v518 = vpop.f32.mrb[0].mxu0
    %v519 = vadd.f32 %v319, %v518
    %v520 = vpop.f32.mrb[0].mxu0
    %v521 = vpop.f32.mrb[0].mxu0
    %522 = vdwg.mxu0
    %v523 = vmax.f32 %v517, 0.0
    %v524 = vmax.f32 %v519, 0.0
    %v525 = vld [vmem:[#allocation9] sm:$0xff]
    %v526 = vld [vmem:[#allocation9 + $0x8] sm:$0xff]
    %v527 = vld [vmem:[#allocation9 + $0x10] sm:$0xff]
    %v528 = vld [vmem:[#allocation9 + $0x18] sm:$0xff]
    %v529 = vld [vmem:[#allocation9 + $0x20] sm:$0xff]
    %v530 = vld [vmem:[#allocation9 + $0x28] sm:$0xff]
    %v531 = vld [vmem:[#allocation9 + $0x30] sm:$0xff]
    %v532 = vld [vmem:[#allocation9 + $0x38] sm:$0xff]
    %v533 = vld [vmem:[#allocation9 + $0x40] sm:$0xff]
    %v534 = vld [vmem:[#allocation9 + $0x48] sm:$0xff]
    %v535 = vld [vmem:[#allocation9 + $0x50] sm:$0xff]
    %v536 = vld [vmem:[#allocation9 + $0x58] sm:$0xff]
    %v537 = vld [vmem:[#allocation9 + $0x60] sm:$0xff]
    %v538 = vld [vmem:[#allocation9 + $0x68] sm:$0xff]
    %v539 = vld [vmem:[#allocation9 + $0x70] sm:$0xff]
    %v540 = vld [vmem:[#allocation9 + $0x78] sm:$0xff]
    %v541 = vld [vmem:[#allocation9 + $0x80] sm:$0xff]
    %v542 = vld [vmem:[#allocation9 + $0x88] sm:$0xff]
    %v543 = vld [vmem:[#allocation9 + $0x90] sm:$0xff]
    %v544 = vld [vmem:[#allocation9 + $0x98] sm:$0xff]
    %v545 = vld [vmem:[#allocation9 + $0xa0] sm:$0xff]
    %v546 = vld [vmem:[#allocation9 + $0xa8] sm:$0xff]
    %v547 = vld [vmem:[#allocation9 + $0xb0] sm:$0xff]
    %v548 = vld [vmem:[#allocation9 + $0xb8] sm:$0xff]
    %v549 = vld [vmem:[#allocation9 + $0xc0] sm:$0xff]
    %v550 = vld [vmem:[#allocation9 + $0xc8] sm:$0xff]
    %v551 = vld [vmem:[#allocation9 + $0xd0] sm:$0xff]
    %v552 = vld [vmem:[#allocation9 + $0xd8] sm:$0xff]
    %v553 = vld [vmem:[#allocation9 + $0xe0] sm:$0xff]
    %v554 = vld [vmem:[#allocation9 + $0xe8] sm:$0xff]
    %v555 = vld [vmem:[#allocation9 + $0xf0] sm:$0xff]
    %v556 = vld [vmem:[#allocation9 + $0xf8] sm:$0xff]
    %v557 = vld [vmem:[%s7] sm:$0x3]
    %v559 = vlaneseq
    %v560 = vshrl.u32 %v559, 7
    %v561 = vsub.s32 0, %v560
    %v562 = vrot.slane %v557, %v561
    %v563 = vlaneseq
    %v564 = vshrl.u32 %v563, 7
    %v565 = vsub.s32 1, %v564
    %v566 = vrot.slane %v557, %v565
    %v601 = vunpack.c.l.b16 %v525
    %v602 = vunpack.c.h.b16 %v525
    %v603 = vunpack.c.l.b16 %v526
    %v604 = vunpack.c.h.b16 %v526
    %v605 = vunpack.c.l.b16 %v527
    %v606 = vunpack.c.h.b16 %v527
    %v607 = vunpack.c.l.b16 %v528
    %v608 = vunpack.c.h.b16 %v528
    %v609 = vunpack.c.l.b16 %v529
    %v610 = vunpack.c.h.b16 %v529
    %v611 = vunpack.c.l.b16 %v530
    %v612 = vunpack.c.h.b16 %v530
    %v613 = vunpack.c.l.b16 %v531
    %v614 = vunpack.c.h.b16 %v531
    %v615 = vunpack.c.l.b16 %v532
    %v616 = vunpack.c.h.b16 %v532
    %v617 = vunpack.c.l.b16 %v533
    %v618 = vunpack.c.h.b16 %v533
    %v619 = vunpack.c.l.b16 %v534
    %v620 = vunpack.c.h.b16 %v534
    %v621 = vunpack.c.l.b16 %v535
    %v622 = vunpack.c.h.b16 %v535
    %v623 = vunpack.c.l.b16 %v536
    %v624 = vunpack.c.h.b16 %v536
    %v625 = vunpack.c.l.b16 %v537
    %v626 = vunpack.c.h.b16 %v537
    %v627 = vunpack.c.l.b16 %v538
    %v628 = vunpack.c.h.b16 %v538
    %v629 = vunpack.c.l.b16 %v539
    %v630 = vunpack.c.h.b16 %v539
    %v631 = vunpack.c.l.b16 %v540
    %v632 = vunpack.c.h.b16 %v540
    %v633 = vunpack.c.l.b16 %v541
    %v634 = vunpack.c.h.b16 %v541
    %v635 = vunpack.c.l.b16 %v542
    %v636 = vunpack.c.h.b16 %v542
    %v637 = vunpack.c.l.b16 %v543
    %v638 = vunpack.c.h.b16 %v543
    %v639 = vunpack.c.l.b16 %v544
    %v640 = vunpack.c.h.b16 %v544
    %v641 = vunpack.c.l.b16 %v545
    %v642 = vunpack.c.h.b16 %v545
    %v643 = vunpack.c.l.b16 %v546
    %v644 = vunpack.c.h.b16 %v546
    %v645 = vunpack.c.l.b16 %v547
    %v646 = vunpack.c.h.b16 %v547
    %v647 = vunpack.c.l.b16 %v548
    %v648 = vunpack.c.h.b16 %v548
    %v649 = vunpack.c.l.b16 %v549
    %v650 = vunpack.c.h.b16 %v549
    %v651 = vunpack.c.l.b16 %v550
    %v652 = vunpack.c.h.b16 %v550
    %v653 = vunpack.c.l.b16 %v551
    %v654 = vunpack.c.h.b16 %v551
    %v655 = vunpack.c.l.b16 %v552
    %v656 = vunpack.c.h.b16 %v552
    %v657 = vunpack.c.l.b16 %v553
    %v658 = vunpack.c.h.b16 %v553
    %v659 = vunpack.c.l.b16 %v554
    %v660 = vunpack.c.h.b16 %v554
    %v661 = vunpack.c.l.b16 %v555
    %v662 = vunpack.c.h.b16 %v555
    %v663 = vunpack.c.l.b16 %v556
    %v664 = vunpack.c.h.b16 %v556
    %v665 = vpack.c.b16 %v603, %v601
    %v666 = vpack.c.b16 %v604, %v602
    %v667 = vpack.c.b16 %v607, %v605
    %v668 = vpack.c.b16 %v608, %v606
    %v669 = vpack.c.b16 %v611, %v609
    %v670 = vpack.c.b16 %v612, %v610
    %v671 = vpack.c.b16 %v615, %v613
    %v672 = vpack.c.b16 %v616, %v614
    %v673 = vpack.c.b16 %v619, %v617
    %v674 = vpack.c.b16 %v620, %v618
    %v675 = vpack.c.b16 %v623, %v621
    %v676 = vpack.c.b16 %v624, %v622
    %v677 = vpack.c.b16 %v627, %v625
    %v678 = vpack.c.b16 %v628, %v626
    %v679 = vpack.c.b16 %v631, %v629
    %v680 = vpack.c.b16 %v632, %v630
    %v681 = vpack.c.b16 %v635, %v633
    %v682 = vpack.c.b16 %v636, %v634
    %v683 = vpack.c.b16 %v639, %v637
    %v684 = vpack.c.b16 %v640, %v638
    %v685 = vpack.c.b16 %v643, %v641
    %v686 = vpack.c.b16 %v644, %v642
    %v687 = vpack.c.b16 %v647, %v645
    %v688 = vpack.c.b16 %v648, %v646
    %v689 = vpack.c.b16 %v651, %v649
    %v690 = vpack.c.b16 %v652, %v650
    %v691 = vpack.c.b16 %v655, %v653
    %v692 = vpack.c.b16 %v656, %v654
    %v693 = vpack.c.b16 %v659, %v657
    %v694 = vpack.c.b16 %v660, %v658
    %v695 = vpack.c.b16 %v663, %v661
    %v696 = vpack.c.b16 %v664, %v662
    %729 = vmatprep.subr.bf16.mxu0 %v666
    %730 = vmatpush1.bf16.msra.mxu0 %v665
    %731 = vmatprep.subr.bf16.mxu0 %v668
    %732 = vmatpush1.bf16.msra.mxu0 %v667
    %733 = vmatprep.subr.bf16.mxu0 %v670
    %734 = vmatpush1.bf16.msra.mxu0 %v669
    %735 = vmatprep.subr.bf16.mxu0 %v672
    %736 = vmatpush1.bf16.msra.mxu0 %v671
    %737 = vmatprep.subr.bf16.mxu0 %v674
    %738 = vmatpush1.bf16.msra.mxu0 %v673
    %739 = vmatprep.subr.bf16.mxu0 %v676
    %740 = vmatpush1.bf16.msra.mxu0 %v675
    %741 = vmatprep.subr.bf16.mxu0 %v678
    %742 = vmatpush1.bf16.msra.mxu0 %v677
    %743 = vmatprep.subr.bf16.mxu0 %v680
    %744 = vmatpush1.bf16.msra.mxu0 %v679
    %745 = vmatprep.subr.bf16.mxu0 %v682
    %746 = vmatpush1.bf16.msra.mxu0 %v681
    %747 = vmatprep.subr.bf16.mxu0 %v684
    %748 = vmatpush1.bf16.msra.mxu0 %v683
    %749 = vmatprep.subr.bf16.mxu0 %v686
    %750 = vmatpush1.bf16.msra.mxu0 %v685
    %751 = vmatprep.subr.bf16.mxu0 %v688
    %752 = vmatpush1.bf16.msra.mxu0 %v687
    %753 = vmatprep.subr.bf16.mxu0 %v690
    %754 = vmatpush1.bf16.msra.mxu0 %v689
    %755 = vmatprep.subr.bf16.mxu0 %v692
    %756 = vmatpush1.bf16.msra.mxu0 %v691
    %757 = vmatprep.subr.bf16.mxu0 %v694
    %758 = vmatpush1.bf16.msra.mxu0 %v693
    %759 = vmatprep.subr.bf16.mxu0 %v696
    %760 = vmatpush1.bf16.msra.mxu0 %v695
    %761 = vmatprep.mubr.bf16.mxu0 %v277
    %762 = vmatmul.mubr.bf16.gmra.mrb[0].mxu0 %v276
    %v763 = vpop.f32.mrb[0].mxu0
    %v764 = vadd.f32 %v562, %v763
    %v765 = vpop.f32.mrb[0].mxu0
    %v766 = vadd.f32 %v566, %v765
    %v767 = vpop.f32.mrb[0].mxu0
    %v768 = vpop.f32.mrb[0].mxu0
    %769 = vdwg.mxu0
    %v770 = vmax.f32 %v764, 0.0
    %v771 = vmax.f32 %v766, 0.0
    %v772 = vld [vmem:[%s8] ss:$2 sm:$0x3]
    %v774 = vlaneseq
    %v775 = vshrl.u32 %v774, 7
    %v776 = vsub.s32 0, %v775
    %v777 = vrot.slane %v772, %v776
    %v778 = vlaneseq
    %v779 = vshrl.u32 %v778, 7
    %v780 = vsub.s32 1, %v779
    %v781 = vrot.slane %v772, %v780
    %v784 = vmul.f32 %v523, %v777
    %v785 = vmul.f32 %v524, %v781
    %v786 = vadd.f32 %v784, %v785
    %787 = vadd.xlane.f32.xlu0 %v786
    %v788 = vpop.xlane.xlu0 %787
    %s789 = scalar_lea.vmem %s8, 1
    %v790 = vld [vmem:[%s789] ss:$2 sm:$0x3]
    %v792 = vlaneseq
    %v793 = vshrl.u32 %v792, 7
    %v794 = vsub.s32 0, %v793
    %v795 = vrot.slane %v790, %v794
    %v796 = vlaneseq
    %v797 = vshrl.u32 %v796, 7
    %v798 = vsub.s32 1, %v797
    %v799 = vrot.slane %v790, %v798
    %v802 = vmul.f32 %v770, %v795
    %v803 = vmul.f32 %v771, %v799
    %v804 = vadd.f32 %v802, %v803
    %805 = vadd.xlane.f32.xlu0 %v804
    %v806 = vpop.xlane.xlu0 %805
    %vm807 = vcmask 7168
    %v808 = vsel %vm807, %v788, %v806
    %v809 = vld [vmem:[%s9] sm:$0x1]
    %v811 = vlaneseq
    %v812 = vshrl.u32 %v811, 7
    %v813 = vsub.s32 0, %v812
    %v814 = vrot.slane %v809, %v813
    %v816 = vadd.f32 %v808, %v814
    %vm817 = vcmask 15360
    %818 = vst.msk [vmem:[%s10] sm:$0xff] %vm817, %v816
    // Predicated region
    $region62: #{critic_forward.1} parent=1 // pred_check
      _
    $region63: #{critic_forward.1} parent=1 // pred_check_branch
      %820 = sbr.rel (0) target = $region65
    $region64: #{critic_forward.1} parent=1 // pred_region
      _
    $region65: #{critic_forward.1} parent=1 // pred_fallthru
      _
    // Predicated region
    $region66: #{critic_forward.1} parent=1 // pred_check
      _
    $region67: #{critic_forward.1} parent=1 // pred_check_branch
      %822 = sbr.rel (0) target = $region69
    $region68: #{critic_forward.1} parent=1 // pred_region
      _
    $region69: #{critic_forward.1} parent=1 // pred_fallthru
      _
    %823 = vsyncpa [#allocation3], 1
    %824 = vsyncpa [#allocation5], 1
    %825 = vsyncpa [#allocation8], 1

</llo_original>
